<compile_context>
chip_gen: v7x
topology: tpu7x:2x2x1
jax: 0.10.0
libtpu: 0.0.40
codegen_flags: <defaults>
</compile_context>

<pallas_src>
import jax
import jax.numpy as jnp
from jax.experimental import pallas as pl
from jax.experimental.pallas import tpu as pltpu

HID = 40   # hidden width of the MLP
AUG = 48   # 40 hidden rows + 1 ones row (bias carrier), padded to a sublane multiple
XR = 8     # augmented input rows: row 0 = x, row 1 = ones, rows 2..7 = zero padding


def three_layer_kernel(x_ref, w1_ref, w2_ref, w3_ref, w4_ref, o_ref):
    cdt = w1_ref.dtype                                         # f32 or bf16 MXU operands
    xa = x_ref[...]                                            # [8, tb] (batch on lanes)

    # fc1 + bias: [48, 8] @ [8, tb] -> [48, tb]; row 40 becomes relu(1) = 1 (bias carrier).
    h = jnp.dot(w1_ref[...], xa, preferred_element_type=jnp.float32)
    h = jnp.maximum(h, 0.0).astype(cdt)

    # fc2 + bias: [48, 48] @ [48, tb]; the ones row propagates (relu(1) = 1).
    h = jnp.dot(w2_ref[...], h, preferred_element_type=jnp.float32)
    h = jnp.maximum(h, 0.0).astype(cdt)

    # fc3 + bias.
    h = jnp.dot(w3_ref[...], h, preferred_element_type=jnp.float32)
    h = jnp.maximum(h, 0.0).astype(cdt)

    # fc4 + bias: [8, 48] @ [48, tb]; row 0 is the real output, rows 1..7 are zeros.
    y = jnp.dot(w4_ref[...], h, preferred_element_type=jnp.float32)
    o_ref[...] = y.astype(o_ref.dtype)


def _augment_params(params, compute_dtype):
    """Fold biases into MXU weight matrices via an augmented ones row; pad to 8/48."""
    w1, b1 = params["w1"], params["b1"]   # [40, 1], [40]
    w2, b2 = params["w2"], params["b2"]   # [40, 40], [40]
    w3, b3 = params["w3"], params["b3"]   # [40, 40], [40]
    w4, b4 = params["w4"], params["b4"]   # [1, 40], [1]

    w1a = jnp.zeros((AUG, XR), jnp.float32)
    w1a = w1a.at[:HID, 0].set(w1[:, 0]).at[:HID, 1].set(b1).at[HID, 1].set(1.0)

    def mid(w, b):
        wa = jnp.zeros((AUG, AUG), jnp.float32)
        return wa.at[:HID, :HID].set(w).at[:HID, HID].set(b).at[HID, HID].set(1.0)

    w2a, w3a = mid(w2, b2), mid(w3, b3)

    w4a = jnp.zeros((XR, AUG), jnp.float32)
    w4a = w4a.at[0, :HID].set(w4[0]).at[0, HID].set(b4[0])

    cast = lambda a: a.astype(compute_dtype)
    return cast(w1a), cast(w2a), cast(w3a), cast(w4a)


def three_layer_forward(x, params, *, tb=None, compute_dtype=jnp.float32):
    """x: [B, 1] float32; params: PyTorch-convention weights ([out, in]) and biases ([out])."""
    B = x.shape[0]
    B_pad128 = pl.cdiv(B, 128) * 128
    if tb is None:
        # One big step for small/medium B; cap the lane tile so the [48, tb] f32
        # intermediates stay well inside v7x's 64 MiB VMEM.  Pass a smaller tb to force
        # multiple grid steps (e.g. to split the batch across v7x's two TensorCores).
        tb = min(B_pad128, 16384)
    tb = max(128, pl.cdiv(tb, 128) * 128)
    B_pad = pl.cdiv(B, tb) * tb
    n_steps = B_pad // tb

    # Augmented, lane-dense-on-batch input: row 0 = x, row 1 = ones (bias carrier).
    x_aug = jnp.zeros((XR, B_pad), jnp.float32)
    x_aug = x_aug.at[0, :B].set(x[:, 0]).at[1, :].set(1.0)
    x_aug = x_aug.astype(compute_dtype)

    w1a, w2a, w3a, w4a = _augment_params(params, compute_dtype)

    const = lambda i: (0, 0)
    in_specs = [
        pl.BlockSpec((XR, tb), lambda i: (0, i)),   # activations walk the batch grid
        pl.BlockSpec(w1a.shape, const),             # weights/biases stay VMEM-resident
        pl.BlockSpec(w2a.shape, const),
        pl.BlockSpec(w3a.shape, const),
        pl.BlockSpec(w4a.shape, const),
    ]

    itemsize = jnp.dtype(compute_dtype).itemsize
    flops = 2 * B_pad * (AUG * XR + AUG * AUG + AUG * AUG + XR * AUG)
    bytes_accessed = (itemsize * XR * B_pad                       # x in
                      + 4 * XR * B_pad                            # y out (f32)
                      + itemsize * (AUG * XR + 2 * AUG * AUG + XR * AUG))

    out_aug = pl.pallas_call(
        three_layer_kernel,
        out_shape=jax.ShapeDtypeStruct((XR, B_pad), jnp.float32),
        grid=(n_steps,),
        in_specs=in_specs,
        out_specs=pl.BlockSpec((XR, tb), lambda i: (0, i)),
        compiler_params=pltpu.CompilerParams(
            dimension_semantics=("parallel",),         # v7x can shard steps over 2 TCs
            vmem_limit_bytes=48 * 1024 * 1024),        # explicit cap, safe on v7x's 64 MiB
        cost_estimate=pl.CostEstimate(
            flops=flops, transcendentals=0, bytes_accessed=bytes_accessed),
    )(x_aug, w1a, w2a, w3a, w4a)

    # Back to PyTorch layout [B, 1].
    return out_aug[0, :B][:, None]


def init_params(key):
    """Deterministic PyTorch-like init (uniform in +/- 1/sqrt(fan_in))."""
    dims = [(40, 1), (40, 40), (40, 40), (1, 40)]   # (out, in) per fc layer
    params = {}
    for i, (out_f, in_f) in enumerate(dims, start=1):
        key, kw, kb = jax.random.split(key, 3)
        bound = 1.0 / jnp.sqrt(jnp.float32(in_f))
        params[f"w{i}"] = jax.random.uniform(kw, (out_f, in_f), jnp.float32, -bound, bound)
        params[f"b{i}"] = jax.random.uniform(kb, (out_f,), jnp.float32, -bound, bound)
    return params


def reference_forward(x, params):
    y = x @ params["w1"].T + params["b1"]
    y = jnp.maximum(y, 0.0)
    y = y @ params["w2"].T + params["b2"]
    y = jnp.maximum(y, 0.0)
    y = y @ params["w3"].T + params["b3"]
    y = jnp.maximum(y, 0.0)
    y = y @ params["w4"].T + params["b4"]
    return y


if __name__ == "__main__":
    key = jax.random.PRNGKey(0)
    key, kx1, kx2, kx3 = jax.random.split(key, 4)
    params = init_params(key)

    # Keep pad/slice plumbing fused with the pallas_call.
    fwd = jax.jit(lambda xx: three_layer_forward(xx, params))

    # Small-batch path: pads only to 128 lanes, single grid step.
    B = 8
    x = jax.random.normal(kx1, (B, 1), jnp.float32)
    out = jax.block_until_ready(fwd(x))
    ref = reference_forward(x, params)
    assert out.shape == (B, 1)
    assert jnp.allclose(out, ref, atol=1e-5, rtol=1e-5)

    # Medium batch: single big tile, exercises lane padding (1500 -> 1536).
    B2 = 1500
    x2 = jax.random.normal(kx2, (B2, 1), jnp.float32)
    out2 = jax.block_until_ready(fwd(x2))
    ref2 = reference_forward(x2, params)
    assert out2.shape == (B2, 1)
    assert jnp.allclose(out2, ref2, atol=1e-5, rtol=1e-5)

    # Multi-step grid path (forced small tile) to exercise batch pipelining.
    B3 = 4096
    x3 = jax.random.normal(kx3, (B3, 1), jnp.float32)
    out3 = jax.block_until_ready(
        jax.jit(lambda xx: three_layer_forward(xx, params, tb=1024))(x3))
    ref3 = reference_forward(x3, params)
    assert out3.shape == (B3, 1)
    assert jnp.allclose(out3, ref3, atol=1e-5, rtol=1e-5)

    # bf16 compute path (v6e/v7x-oriented): bf16 MXU operands, f32 accumulate, f32 ReLU.
    out_bf16 = jax.block_until_ready(
        jax.jit(lambda xx: three_layer_forward(xx, params,
                                               compute_dtype=jnp.bfloat16))(x3))
    assert jnp.allclose(out_bf16, ref3, atol=1e-1, rtol=1e-1)

    print("KERNEL_OK")
</pallas_src>

<mosaic_0001>
module attributes {stable_mosaic.version = 11 : i64} {
  func.func @three_layer_kernel(%arg0: i32, %arg1: memref<8x128xf32, #tpu.memory_space<vmem>>, %arg2: memref<48x8xf32, #tpu.memory_space<vmem>>, %arg3: memref<48x48xf32, #tpu.memory_space<vmem>>, %arg4: memref<48x48xf32, #tpu.memory_space<vmem>>, %arg5: memref<8x48xf32, #tpu.memory_space<vmem>>, %arg6: memref<8x128xf32, #tpu.memory_space<vmem>>) attributes {dimension_semantics = [#tpu.dimension_semantics<parallel>], iteration_bounds = array<i64: 1>, scalar_prefetch = 0 : i64, scratch_operands = 0 : i64, tpu.core_type = #tpu.core_type<tc>, window_params = [{transform_indices = @transform_0, window_bounds = array<i64: 8, 128>}, {pipeline_mode = #tpu.pipeline_mode<synchronous>, transform_indices = @transform_1, window_bounds = array<i64: 48, 8>}, {pipeline_mode = #tpu.pipeline_mode<synchronous>, transform_indices = @transform_2, window_bounds = array<i64: 48, 48>}, {pipeline_mode = #tpu.pipeline_mode<synchronous>, transform_indices = @transform_3, window_bounds = array<i64: 48, 48>}, {pipeline_mode = #tpu.pipeline_mode<synchronous>, transform_indices = @transform_4, window_bounds = array<i64: 8, 48>}, {transform_indices = @transform_5, window_bounds = array<i64: 8, 128>}]} {
    %c0 = arith.constant 0 : index
    %c0_0 = arith.constant 0 : index
    %0 = vector.load %arg1[%c0, %c0_0] : memref<8x128xf32, #tpu.memory_space<vmem>>, vector<8x128xf32>
    %c0_1 = arith.constant 0 : index
    %c0_2 = arith.constant 0 : index
    %1 = vector.load %arg2[%c0_1, %c0_2] : memref<48x8xf32, #tpu.memory_space<vmem>>, vector<48x8xf32>
    %cst = arith.constant dense<0.000000e+00> : vector<48x128xf32>
    %2 = tpu.matmul %1, %0, %cst {dimension_numbers = #tpu.dot_dimension_numbers<[1], [0], [0], [1], [0, 0, 1, 1], [], []>} : vector<48x8xf32>, vector<8x128xf32>, vector<48x128xf32> -> vector<48x128xf32>
    %cst_3 = arith.constant 0.000000e+00 : f32
    %3 = vector.broadcast %cst_3 : f32 to vector<48x128xf32>
    %4 = arith.maximumf %2, %3 : vector<48x128xf32>
    %c0_4 = arith.constant 0 : index
    %c0_5 = arith.constant 0 : index
    %5 = vector.load %arg3[%c0_4, %c0_5] : memref<48x48xf32, #tpu.memory_space<vmem>>, vector<48x48xf32>
    %cst_6 = arith.constant dense<0.000000e+00> : vector<48x128xf32>
    %6 = tpu.matmul %5, %4, %cst_6 {dimension_numbers = #tpu.dot_dimension_numbers<[1], [0], [0], [1], [0, 0, 1, 1], [], []>} : vector<48x48xf32>, vector<48x128xf32>, vector<48x128xf32> -> vector<48x128xf32>
    %cst_7 = arith.constant 0.000000e+00 : f32
    %7 = vector.broadcast %cst_7 : f32 to vector<48x128xf32>
    %8 = arith.maximumf %6, %7 : vector<48x128xf32>
    %c0_8 = arith.constant 0 : index
    %c0_9 = arith.constant 0 : index
    %9 = vector.load %arg4[%c0_8, %c0_9] : memref<48x48xf32, #tpu.memory_space<vmem>>, vector<48x48xf32>
    %cst_10 = arith.constant dense<0.000000e+00> : vector<48x128xf32>
    %10 = tpu.matmul %9, %8, %cst_10 {dimension_numbers = #tpu.dot_dimension_numbers<[1], [0], [0], [1], [0, 0, 1, 1], [], []>} : vector<48x48xf32>, vector<48x128xf32>, vector<48x128xf32> -> vector<48x128xf32>
    %cst_11 = arith.constant 0.000000e+00 : f32
    %11 = vector.broadcast %cst_11 : f32 to vector<48x128xf32>
    %12 = arith.maximumf %10, %11 : vector<48x128xf32>
    %c0_12 = arith.constant 0 : index
    %c0_13 = arith.constant 0 : index
    %13 = vector.load %arg5[%c0_12, %c0_13] : memref<8x48xf32, #tpu.memory_space<vmem>>, vector<8x48xf32>
    %cst_14 = arith.constant dense<0.000000e+00> : vector<8x128xf32>
    %14 = tpu.matmul %13, %12, %cst_14 {dimension_numbers = #tpu.dot_dimension_numbers<[1], [0], [0], [1], [0, 0, 1, 1], [], []>} : vector<8x48xf32>, vector<48x128xf32>, vector<8x128xf32> -> vector<8x128xf32>
    %c0_15 = arith.constant 0 : index
    %c0_16 = arith.constant 0 : index
    %15 = vector.load %arg6[%c0_15, %c0_16] : memref<8x128xf32, #tpu.memory_space<vmem>>, vector<8x128xf32>
    tpu.vector_store %arg6[%c0_15, %c0_16], %14 {strides = array<i32>} : memref<8x128xf32, #tpu.memory_space<vmem>>, vector<8x128xf32>,
    return
  }
  func.func @transform_0(%arg0: i32) -> (i32, i32) {
    %c0_i32 = arith.constant 0 : i32
    %c0_i32_0 = arith.constant 0 : i32
    return %c0_i32, %arg0 : i32, i32
  }
  func.func @transform_1(%arg0: i32) -> (i32, i32) {
    %c0_i32 = arith.constant 0 : i32
    %c0_i32_0 = arith.constant 0 : i32
    %c0_i32_1 = arith.constant 0 : i32
    return %c0_i32, %c0_i32_0 : i32, i32
  }
  func.func @transform_2(%arg0: i32) -> (i32, i32) {
    %c0_i32 = arith.constant 0 : i32
    %c0_i32_0 = arith.constant 0 : i32
    %c0_i32_1 = arith.constant 0 : i32
    return %c0_i32, %c0_i32_0 : i32, i32
  }
  func.func @transform_3(%arg0: i32) -> (i32, i32) {
    %c0_i32 = arith.constant 0 : i32
    %c0_i32_0 = arith.constant 0 : i32
    %c0_i32_1 = arith.constant 0 : i32
    return %c0_i32, %c0_i32_0 : i32, i32
  }
  func.func @transform_4(%arg0: i32) -> (i32, i32) {
    %c0_i32 = arith.constant 0 : i32
    %c0_i32_0 = arith.constant 0 : i32
    %c0_i32_1 = arith.constant 0 : i32
    return %c0_i32, %c0_i32_0 : i32, i32
  }
  func.func @transform_5(%arg0: i32) -> (i32, i32) {
    %c0_i32 = arith.constant 0 : i32
    %c0_i32_0 = arith.constant 0 : i32
    return %c0_i32, %arg0 : i32, i32
  }
}

</mosaic_0001>

<llo_original>
// kernel: _lambda_.1
$region0: #{_lambda_.1}
  #allocation0 [shape = 'u32[]', space=smem, size = 0x4, offset = 0x4, fixed_abs, tag = 'smem constant byte address 0x4 - core index']
  #allocation1 [shape = 'u32[144,128]{1,0:T(1,128)}', space=vmem, size = 0x12000, scoped, tag = 'internal scratch']
  %s0 = inlined_call_operand.vmem [shape: f32[8,128], index: 0, kind: input, shape index: {}]
  %s1 = inlined_call_operand.vmem [shape: f32[48,8], index: 1, kind: input, shape index: {}]
  %s2 = inlined_call_operand.vmem [shape: f32[48,48], index: 2, kind: input, shape index: {}]
  %s3 = inlined_call_operand.vmem [shape: f32[48,48], index: 3, kind: input, shape index: {}]
  %s4 = inlined_call_operand.vmem [shape: f32[8,48], index: 4, kind: input, shape index: {}]
  %s5 = inlined_call_operand.vmem [shape: f32[8,128], index: 5, kind: output, shape index: {}]
  %s6 = sld [smem:[#allocation0]]
  $region30: #{_lambda_.1} parent=0
    _
  %s8 = ssub.s32 1, %s6
  %s9 = scalar_select 0, %s8, %s6
  // Predicated region
  $region2: #{_lambda_.1} parent=0 // pred_check
    _
  $region3: #{_lambda_.1} parent=0 // pred_check_branch
    %11 = sbr.rel (0) target = $region5
  $region4: #{_lambda_.1} parent=0 // pred_region
    _
  $region5: #{_lambda_.1} parent=0 // pred_fallthru
    _
  // Predicated region
  $region6: #{_lambda_.1} parent=0 // pred_check
    _
  $region7: #{_lambda_.1} parent=0 // pred_check_branch
    %13 = sbr.rel (0) target = $region9
  $region8: #{_lambda_.1} parent=0 // pred_region
    _
  $region9: #{_lambda_.1} parent=0 // pred_fallthru
    _
  // Predicated region
  $region10: #{_lambda_.1} parent=0 // pred_check
    _
  $region11: #{_lambda_.1} parent=0 // pred_check_branch
    %15 = sbr.rel (0) target = $region13
  $region12: #{_lambda_.1} parent=0 // pred_region
    _
  $region13: #{_lambda_.1} parent=0 // pred_fallthru
    _
  // Predicated region
  $region14: #{_lambda_.1} parent=0 // pred_check
    _
  $region15: #{_lambda_.1} parent=0 // pred_check_branch
    %17 = sbr.rel (0) target = $region17
  $region16: #{_lambda_.1} parent=0 // pred_region
    _
  $region17: #{_lambda_.1} parent=0 // pred_fallthru
    _
  // Predicated region
  $region18: #{_lambda_.1} parent=0 // pred_check
    _
  $region19: #{_lambda_.1} parent=0 // pred_check_branch
    %19 = sbr.rel (0) target = $region21
  $region20: #{_lambda_.1} parent=0 // pred_region
    _
  $region21: #{_lambda_.1} parent=0 // pred_fallthru
    _
  %v20 = vld [vmem:[%s0] sm:$0xff]
  %v21 = vld [vmem:[%s1] sm:$0xff]
  %v22 = vld [vmem:[%s1 + $0x8] sm:$0xff]
  %v23 = vld [vmem:[%s1 + $0x10] sm:$0xff]
  %v24 = vld [vmem:[%s1 + $0x18] sm:$0xff]
  %v25 = vld [vmem:[%s1 + $0x20] sm:$0xff]
  %v26 = vld [vmem:[%s1 + $0x28] sm:$0xff]
  %vm27 = vcmask 64512
  %v29 = vsel %vm27, %v21, 0
  %v32 = vsel %vm27, %v22, 0
  %v35 = vsel %vm27, %v23, 0
  %v38 = vsel %vm27, %v24, 0
  %v41 = vsel %vm27, %v25, 0
  %v44 = vsel %vm27, %v26, 0
  %46 = vmatprep.subr.mxu0 0.0
  %47 = vmatpush1.msra.mxu0 %v20
  %48 = vmatprep.subr.mxu0 0.0
  %49 = vmatpush1.msra.mxu0 0.0
  %50 = vmatprep.subr.mxu0 0.0
  %51 = vmatpush1.msra.mxu0 0.0
  %52 = vmatprep.subr.mxu0 0.0
  %53 = vmatpush1.msra.mxu0 0.0
  %54 = vmatprep.subr.mxu0 0.0
  %55 = vmatpush1.msra.mxu0 0.0
  %56 = vmatprep.subr.mxu0 0.0
  %57 = vmatpush1.msra.mxu0 0.0
  %58 = vmatprep.subr.mxu0 0.0
  %59 = vmatpush1.msra.mxu0 0.0
  %60 = vmatprep.subr.mxu0 0.0
  %61 = vmatpush1.msra.mxu0 0.0
  %62 = vmatprep.subr.mxu0 0.0
  %63 = vmatpush1.msra.mxu0 0.0
  %64 = vmatprep.subr.mxu0 0.0
  %65 = vmatpush1.msra.mxu0 0.0
  %66 = vmatprep.subr.mxu0 0.0
  %67 = vmatpush1.msra.mxu0 0.0
  %68 = vmatprep.subr.mxu0 0.0
  %69 = vmatpush1.msra.mxu0 0.0
  %70 = vmatprep.subr.mxu0 0.0
  %71 = vmatpush1.msra.mxu0 0.0
  %72 = vmatprep.subr.mxu0 0.0
  %73 = vmatpush1.msra.mxu0 0.0
  %74 = vmatprep.subr.mxu0 0.0
  %75 = vmatpush1.msra.mxu0 0.0
  %76 = vmatprep.subr.mxu0 0.0
  %77 = vmatpush1.msra.mxu0 0.0
  %78 = vmatprep.subr.mxu0 0.0
  %79 = vmatpush1.msra.mxu0 0.0
  %80 = vmatprep.subr.mxu0 0.0
  %81 = vmatpush1.msra.mxu0 0.0
  %82 = vmatprep.subr.mxu0 0.0
  %83 = vmatpush1.msra.mxu0 0.0
  %84 = vmatprep.subr.mxu0 0.0
  %85 = vmatpush1.msra.mxu0 0.0
  %86 = vmatprep.subr.mxu0 0.0
  %87 = vmatpush1.msra.mxu0 0.0
  %88 = vmatprep.subr.mxu0 0.0
  %89 = vmatpush1.msra.mxu0 0.0
  %90 = vmatprep.subr.mxu0 0.0
  %91 = vmatpush1.msra.mxu0 0.0
  %92 = vmatprep.subr.mxu0 0.0
  %93 = vmatpush1.msra.mxu0 0.0
  %94 = vmatprep.subr.mxu0 0.0
  %95 = vmatpush1.msra.mxu0 0.0
  %96 = vmatprep.subr.mxu0 0.0
  %97 = vmatpush1.msra.mxu0 0.0
  %98 = vmatprep.subr.mxu0 0.0
  %99 = vmatpush1.msra.mxu0 0.0
  %100 = vmatprep.subr.mxu0 0.0
  %101 = vmatpush1.msra.mxu0 0.0
  %102 = vmatprep.subr.mxu0 0.0
  %103 = vmatpush1.msra.mxu0 0.0
  %104 = vmatprep.subr.mxu0 0.0
  %105 = vmatpush1.msra.mxu0 0.0
  %106 = vmatprep.subr.mxu0 0.0
  %107 = vmatpush1.msra.mxu0 0.0
  %108 = vmatprep.subr.mxu0 0.0
  %109 = vmatpush1.msra.mxu0 0.0
  %110 = vmatprep.mubr.f32.mxu0 0.0
  %111 = vmatmul.mubr.f32.gmra.mrb[0].mxu0 %v29
  %v112 = vpop.f32.mrb[0].mxu0
  %v113 = vadd.f32 0.0, %v112
  %v114 = vpop.f32.mrb[0].mxu0
  %115 = vmatprep.mubr.f32.mxu0 0.0
  %116 = vmatmul.mubr.f32.gmra.mrb[0].mxu0 %v32
  %v117 = vpop.f32.mrb[0].mxu0
  %v118 = vadd.f32 0.0, %v117
  %v119 = vpop.f32.mrb[0].mxu0
  %120 = vmatprep.mubr.f32.mxu0 0.0
  %121 = vmatmul.mubr.f32.gmra.mrb[0].mxu0 %v35
  %v122 = vpop.f32.mrb[0].mxu0
  %v123 = vadd.f32 0.0, %v122
  %v124 = vpop.f32.mrb[0].mxu0
  %125 = vmatprep.mubr.f32.mxu0 0.0
  %126 = vmatmul.mubr.f32.gmra.mrb[0].mxu0 %v38
  %v127 = vpop.f32.mrb[0].mxu0
  %v128 = vadd.f32 0.0, %v127
  %v129 = vpop.f32.mrb[0].mxu0
  %130 = vmatprep.mubr.f32.mxu0 0.0
  %131 = vmatmul.mubr.f32.gmra.mrb[0].mxu0 %v41
  %v132 = vpop.f32.mrb[0].mxu0
  %v133 = vadd.f32 0.0, %v132
  %v134 = vpop.f32.mrb[0].mxu0
  %135 = vmatprep.mubr.f32.mxu0 0.0
  %136 = vmatmul.mubr.f32.gmra.mrb[0].mxu0 %v44
  %v137 = vpop.f32.mrb[0].mxu0
  %v138 = vadd.f32 0.0, %v137
  %v139 = vpop.f32.mrb[0].mxu0
  %140 = vdwg.mxu0
  %v141 = vmax.f32 %v113, 0.0
  %v142 = vmax.f32 %v118, 0.0
  %v143 = vmax.f32 %v123, 0.0
  %v144 = vmax.f32 %v128, 0.0
  %v145 = vmax.f32 %v133, 0.0
  %v146 = vmax.f32 %v138, 0.0
  %v147 = vld [vmem:[%s2] sm:$0xff]
  %v148 = vld [vmem:[%s2 + $0x8] sm:$0xff]
  %v149 = vld [vmem:[%s2 + $0x10] sm:$0xff]
  %v150 = vld [vmem:[%s2 + $0x18] sm:$0xff]
  %v151 = vld [vmem:[%s2 + $0x20] sm:$0xff]
  %v152 = vld [vmem:[%s2 + $0x28] sm:$0xff]
  %vm153 = vcmask 392192
  %v155 = vsel %vm153, %v147, 0
  %v158 = vsel %vm153, %v148, 0
  %v161 = vsel %vm153, %v149, 0
  %v164 = vsel %vm153, %v150, 0
  %v167 = vsel %vm153, %v151, 0
  %v170 = vsel %vm153, %v152, 0
  %172 = vmatprep.subr.mxu0 0.0
  %173 = vmatpush1.msra.mxu0 %v141
  %174 = vmatprep.subr.mxu0 0.0
  %175 = vmatpush1.msra.mxu0 %v142
  %176 = vmatprep.subr.mxu0 0.0
  %177 = vmatpush1.msra.mxu0 %v143
  %178 = vmatprep.subr.mxu0 0.0
  %179 = vmatpush1.msra.mxu0 %v144
  %180 = vmatprep.subr.mxu0 0.0
  %181 = vmatpush1.msra.mxu0 %v145
  %182 = vmatprep.subr.mxu0 0.0
  %183 = vmatpush1.msra.mxu0 %v146
  %184 = vmatprep.subr.mxu0 0.0
  %185 = vmatpush1.msra.mxu0 0.0
  %186 = vmatprep.subr.mxu0 0.0
  %187 = vmatpush1.msra.mxu0 0.0
  %188 = vmatprep.subr.mxu0 0.0
  %189 = vmatpush1.msra.mxu0 0.0
  %190 = vmatprep.subr.mxu0 0.0
  %191 = vmatpush1.msra.mxu0 0.0
  %192 = vmatprep.subr.mxu0 0.0
  %193 = vmatpush1.msra.mxu0 0.0
  %194 = vmatprep.subr.mxu0 0.0
  %195 = vmatpush1.msra.mxu0 0.0
  %196 = vmatprep.subr.mxu0 0.0
  %197 = vmatpush1.msra.mxu0 0.0
  %198 = vmatprep.subr.mxu0 0.0
  %199 = vmatpush1.msra.mxu0 0.0
  %200 = vmatprep.subr.mxu0 0.0
  %201 = vmatpush1.msra.mxu0 0.0
  %202 = vmatprep.subr.mxu0 0.0
  %203 = vmatpush1.msra.mxu0 0.0
  %204 = vmatprep.subr.mxu0 0.0
  %205 = vmatpush1.msra.mxu0 0.0
  %206 = vmatprep.subr.mxu0 0.0
  %207 = vmatpush1.msra.mxu0 0.0
  %208 = vmatprep.subr.mxu0 0.0
  %209 = vmatpush1.msra.mxu0 0.0
  %210 = vmatprep.subr.mxu0 0.0
  %211 = vmatpush1.msra.mxu0 0.0
  %212 = vmatprep.subr.mxu0 0.0
  %213 = vmatpush1.msra.mxu0 0.0
  %214 = vmatprep.subr.mxu0 0.0
  %215 = vmatpush1.msra.mxu0 0.0
  %216 = vmatprep.subr.mxu0 0.0
  %217 = vmatpush1.msra.mxu0 0.0
  %218 = vmatprep.subr.mxu0 0.0
  %219 = vmatpush1.msra.mxu0 0.0
  %220 = vmatprep.subr.mxu0 0.0
  %221 = vmatpush1.msra.mxu0 0.0
  %222 = vmatprep.subr.mxu0 0.0
  %223 = vmatpush1.msra.mxu0 0.0
  %224 = vmatprep.subr.mxu0 0.0
  %225 = vmatpush1.msra.mxu0 0.0
  %226 = vmatprep.subr.mxu0 0.0
  %227 = vmatpush1.msra.mxu0 0.0
  %228 = vmatprep.subr.mxu0 0.0
  %229 = vmatpush1.msra.mxu0 0.0
  %230 = vmatprep.subr.mxu0 0.0
  %231 = vmatpush1.msra.mxu0 0.0
  %232 = vmatprep.subr.mxu0 0.0
  %233 = vmatpush1.msra.mxu0 0.0
  %234 = vmatprep.subr.mxu0 0.0
  %235 = vmatpush1.msra.mxu0 0.0
  %236 = vmatprep.mubr.f32.mxu0 0.0
  %237 = vmatmul.mubr.f32.gmra.mrb[0].mxu0 %v155
  %v238 = vpop.f32.mrb[0].mxu0
  %v239 = vadd.f32 0.0, %v238
  %v240 = vpop.f32.mrb[0].mxu0
  %241 = vmatprep.mubr.f32.mxu0 0.0
  %242 = vmatmul.mubr.f32.gmra.mrb[0].mxu0 %v158
  %v243 = vpop.f32.mrb[0].mxu0
  %v244 = vadd.f32 0.0, %v243
  %v245 = vpop.f32.mrb[0].mxu0
  %246 = vmatprep.mubr.f32.mxu0 0.0
  %247 = vmatmul.mubr.f32.gmra.mrb[0].mxu0 %v161
  %v248 = vpop.f32.mrb[0].mxu0
  %v249 = vadd.f32 0.0, %v248
  %v250 = vpop.f32.mrb[0].mxu0
  %251 = vmatprep.mubr.f32.mxu0 0.0
  %252 = vmatmul.mubr.f32.gmra.mrb[0].mxu0 %v164
  %v253 = vpop.f32.mrb[0].mxu0
  %v254 = vadd.f32 0.0, %v253
  %v255 = vpop.f32.mrb[0].mxu0
  %256 = vmatprep.mubr.f32.mxu0 0.0
  %257 = vmatmul.mubr.f32.gmra.mrb[0].mxu0 %v167
  %v258 = vpop.f32.mrb[0].mxu0
  %v259 = vadd.f32 0.0, %v258
  %v260 = vpop.f32.mrb[0].mxu0
  %261 = vmatprep.mubr.f32.mxu0 0.0
  %262 = vmatmul.mubr.f32.gmra.mrb[0].mxu0 %v170
  %v263 = vpop.f32.mrb[0].mxu0
  %v264 = vadd.f32 0.0, %v263
  %v265 = vpop.f32.mrb[0].mxu0
  %266 = vdwg.mxu0
  %v267 = vmax.f32 %v239, 0.0
  %v268 = vmax.f32 %v244, 0.0
  %v269 = vmax.f32 %v249, 0.0
  %v270 = vmax.f32 %v254, 0.0
  %v271 = vmax.f32 %v259, 0.0
  %v272 = vmax.f32 %v264, 0.0
  %v273 = vld [vmem:[%s3] sm:$0xff]
  %v274 = vld [vmem:[%s3 + $0x8] sm:$0xff]
  %v275 = vld [vmem:[%s3 + $0x10] sm:$0xff]
  %v276 = vld [vmem:[%s3 + $0x18] sm:$0xff]
  %v277 = vld [vmem:[%s3 + $0x20] sm:$0xff]
  %v278 = vld [vmem:[%s3 + $0x28] sm:$0xff]
  %v280 = vsel %vm153, %v273, 0
  %v283 = vsel %vm153, %v274, 0
  %v286 = vsel %vm153, %v275, 0
  %v289 = vsel %vm153, %v276, 0
  %v292 = vsel %vm153, %v277, 0
  %v295 = vsel %vm153, %v278, 0
  %297 = vmatprep.subr.mxu0 0.0
  %298 = vmatpush1.msra.mxu0 %v267
  %299 = vmatprep.subr.mxu0 0.0
  %300 = vmatpush1.msra.mxu0 %v268
  %301 = vmatprep.subr.mxu0 0.0
  %302 = vmatpush1.msra.mxu0 %v269
  %303 = vmatprep.subr.mxu0 0.0
  %304 = vmatpush1.msra.mxu0 %v270
  %305 = vmatprep.subr.mxu0 0.0
  %306 = vmatpush1.msra.mxu0 %v271
  %307 = vmatprep.subr.mxu0 0.0
  %308 = vmatpush1.msra.mxu0 %v272
  %309 = vmatprep.subr.mxu0 0.0
  %310 = vmatpush1.msra.mxu0 0.0
  %311 = vmatprep.subr.mxu0 0.0
  %312 = vmatpush1.msra.mxu0 0.0
  %313 = vmatprep.subr.mxu0 0.0
  %314 = vmatpush1.msra.mxu0 0.0
  %315 = vmatprep.subr.mxu0 0.0
  %316 = vmatpush1.msra.mxu0 0.0
  %317 = vmatprep.subr.mxu0 0.0
  %318 = vmatpush1.msra.mxu0 0.0
  %319 = vmatprep.subr.mxu0 0.0
  %320 = vmatpush1.msra.mxu0 0.0
  %321 = vmatprep.subr.mxu0 0.0
  %322 = vmatpush1.msra.mxu0 0.0
  %323 = vmatprep.subr.mxu0 0.0
  %324 = vmatpush1.msra.mxu0 0.0
  %325 = vmatprep.subr.mxu0 0.0
  %326 = vmatpush1.msra.mxu0 0.0
  %327 = vmatprep.subr.mxu0 0.0
  %328 = vmatpush1.msra.mxu0 0.0
  %329 = vmatprep.subr.mxu0 0.0
  %330 = vmatpush1.msra.mxu0 0.0
  %331 = vmatprep.subr.mxu0 0.0
  %332 = vmatpush1.msra.mxu0 0.0
  %333 = vmatprep.subr.mxu0 0.0
  %334 = vmatpush1.msra.mxu0 0.0
  %335 = vmatprep.subr.mxu0 0.0
  %336 = vmatpush1.msra.mxu0 0.0
  %337 = vmatprep.subr.mxu0 0.0
  %338 = vmatpush1.msra.mxu0 0.0
  %339 = vmatprep.subr.mxu0 0.0
  %340 = vmatpush1.msra.mxu0 0.0
  %341 = vmatprep.subr.mxu0 0.0
  %342 = vmatpush1.msra.mxu0 0.0
  %343 = vmatprep.subr.mxu0 0.0
  %344 = vmatpush1.msra.mxu0 0.0
  %345 = vmatprep.subr.mxu0 0.0
  %346 = vmatpush1.msra.mxu0 0.0
  %347 = vmatprep.subr.mxu0 0.0
  %348 = vmatpush1.msra.mxu0 0.0
  %349 = vmatprep.subr.mxu0 0.0
  %350 = vmatpush1.msra.mxu0 0.0
  %351 = vmatprep.subr.mxu0 0.0
  %352 = vmatpush1.msra.mxu0 0.0
  %353 = vmatprep.subr.mxu0 0.0
  %354 = vmatpush1.msra.mxu0 0.0
  %355 = vmatprep.subr.mxu0 0.0
  %356 = vmatpush1.msra.mxu0 0.0
  %357 = vmatprep.subr.mxu0 0.0
  %358 = vmatpush1.msra.mxu0 0.0
  %359 = vmatprep.subr.mxu0 0.0
  %360 = vmatpush1.msra.mxu0 0.0
  %361 = vmatprep.mubr.f32.mxu0 0.0
  %362 = vmatmul.mubr.f32.gmra.mrb[0].mxu0 %v280
  %v363 = vpop.f32.mrb[0].mxu0
  %v364 = vadd.f32 0.0, %v363
  %v365 = vpop.f32.mrb[0].mxu0
  %366 = vmatprep.mubr.f32.mxu0 0.0
  %367 = vmatmul.mubr.f32.gmra.mrb[0].mxu0 %v283
  %v368 = vpop.f32.mrb[0].mxu0
  %v369 = vadd.f32 0.0, %v368
  %v370 = vpop.f32.mrb[0].mxu0
  %371 = vmatprep.mubr.f32.mxu0 0.0
  %372 = vmatmul.mubr.f32.gmra.mrb[0].mxu0 %v286
  %v373 = vpop.f32.mrb[0].mxu0
  %v374 = vadd.f32 0.0, %v373
  %v375 = vpop.f32.mrb[0].mxu0
  %376 = vmatprep.mubr.f32.mxu0 0.0
  %377 = vmatmul.mubr.f32.gmra.mrb[0].mxu0 %v289
  %v378 = vpop.f32.mrb[0].mxu0
  %v379 = vadd.f32 0.0, %v378
  %v380 = vpop.f32.mrb[0].mxu0
  %381 = vmatprep.mubr.f32.mxu0 0.0
  %382 = vmatmul.mubr.f32.gmra.mrb[0].mxu0 %v292
  %v383 = vpop.f32.mrb[0].mxu0
  %v384 = vadd.f32 0.0, %v383
  %v385 = vpop.f32.mrb[0].mxu0
  %386 = vmatprep.mubr.f32.mxu0 0.0
  %387 = vmatmul.mubr.f32.gmra.mrb[0].mxu0 %v295
  %v388 = vpop.f32.mrb[0].mxu0
  %v389 = vadd.f32 0.0, %v388
  %v390 = vpop.f32.mrb[0].mxu0
  %391 = vdwg.mxu0
  %v392 = vmax.f32 %v364, 0.0
  %v393 = vmax.f32 %v369, 0.0
  %v394 = vmax.f32 %v374, 0.0
  %v395 = vmax.f32 %v379, 0.0
  %v396 = vmax.f32 %v384, 0.0
  %v397 = vmax.f32 %v389, 0.0
  %v398 = vld [vmem:[%s4] sm:$0xff]
  %v400 = vsel %vm153, %v398, 0
  %402 = vmatprep.subr.mxu0 0.0
  %403 = vmatpush1.msra.mxu0 %v392
  %404 = vmatprep.subr.mxu0 0.0
  %405 = vmatpush1.msra.mxu0 %v393
  %406 = vmatprep.subr.mxu0 0.0
  %407 = vmatpush1.msra.mxu0 %v394
  %408 = vmatprep.subr.mxu0 0.0
  %409 = vmatpush1.msra.mxu0 %v395
  %410 = vmatprep.subr.mxu0 0.0
  %411 = vmatpush1.msra.mxu0 %v396
  %412 = vmatprep.subr.mxu0 0.0
  %413 = vmatpush1.msra.mxu0 %v397
  %414 = vmatprep.subr.mxu0 0.0
  %415 = vmatpush1.msra.mxu0 0.0
  %416 = vmatprep.subr.mxu0 0.0
  %417 = vmatpush1.msra.mxu0 0.0
  %418 = vmatprep.subr.mxu0 0.0
  %419 = vmatpush1.msra.mxu0 0.0
  %420 = vmatprep.subr.mxu0 0.0
  %421 = vmatpush1.msra.mxu0 0.0
  %422 = vmatprep.subr.mxu0 0.0
  %423 = vmatpush1.msra.mxu0 0.0
  %424 = vmatprep.subr.mxu0 0.0
  %425 = vmatpush1.msra.mxu0 0.0
  %426 = vmatprep.subr.mxu0 0.0
  %427 = vmatpush1.msra.mxu0 0.0
  %428 = vmatprep.subr.mxu0 0.0
  %429 = vmatpush1.msra.mxu0 0.0
  %430 = vmatprep.subr.mxu0 0.0
  %431 = vmatpush1.msra.mxu0 0.0
  %432 = vmatprep.subr.mxu0 0.0
  %433 = vmatpush1.msra.mxu0 0.0
  %434 = vmatprep.subr.mxu0 0.0
  %435 = vmatpush1.msra.mxu0 0.0
  %436 = vmatprep.subr.mxu0 0.0
  %437 = vmatpush1.msra.mxu0 0.0
  %438 = vmatprep.subr.mxu0 0.0
  %439 = vmatpush1.msra.mxu0 0.0
  %440 = vmatprep.subr.mxu0 0.0
  %441 = vmatpush1.msra.mxu0 0.0
  %442 = vmatprep.subr.mxu0 0.0
  %443 = vmatpush1.msra.mxu0 0.0
  %444 = vmatprep.subr.mxu0 0.0
  %445 = vmatpush1.msra.mxu0 0.0
  %446 = vmatprep.subr.mxu0 0.0
  %447 = vmatpush1.msra.mxu0 0.0
  %448 = vmatprep.subr.mxu0 0.0
  %449 = vmatpush1.msra.mxu0 0.0
  %450 = vmatprep.subr.mxu0 0.0
  %451 = vmatpush1.msra.mxu0 0.0
  %452 = vmatprep.subr.mxu0 0.0
  %453 = vmatpush1.msra.mxu0 0.0
  %454 = vmatprep.subr.mxu0 0.0
  %455 = vmatpush1.msra.mxu0 0.0
  %456 = vmatprep.subr.mxu0 0.0
  %457 = vmatpush1.msra.mxu0 0.0
  %458 = vmatprep.subr.mxu0 0.0
  %459 = vmatpush1.msra.mxu0 0.0
  %460 = vmatprep.subr.mxu0 0.0
  %461 = vmatpush1.msra.mxu0 0.0
  %462 = vmatprep.subr.mxu0 0.0
  %463 = vmatpush1.msra.mxu0 0.0
  %464 = vmatprep.subr.mxu0 0.0
  %465 = vmatpush1.msra.mxu0 0.0
  %466 = vmatprep.mubr.f32.mxu0 0.0
  %467 = vmatmul.mubr.f32.gmra.mrb[0].mxu0 %v400
  %v468 = vpop.f32.mrb[0].mxu0
  %v469 = vadd.f32 0.0, %v468
  %v470 = vpop.f32.mrb[0].mxu0
  %471 = vdwg.mxu0
  %472 = vst [vmem:[%s5] sm:$0xff] %v469
  // Predicated region
  $region22: #{_lambda_.1} parent=0 // pred_check
    _
  $region23: #{_lambda_.1} parent=0 // pred_check_branch
    %474 = sbr.rel (0) target = $region25
  $region24: #{_lambda_.1} parent=0 // pred_region
    _
  $region25: #{_lambda_.1} parent=0 // pred_fallthru
    _
  // Predicated region
  $region26: #{_lambda_.1} parent=0 // pred_check
    _
  $region27: #{_lambda_.1} parent=0 // pred_check_branch
    %476 = sbr.rel (0) target = $region29
  $region28: #{_lambda_.1} parent=0 // pred_region
    _
  $region29: #{_lambda_.1} parent=0 // pred_fallthru
    _

</llo_original>
